<compile_context>
chip_gen: v5e
topology: v5e:2x2
jax: 0.10.0
libtpu: 0.0.40
codegen_flags: <defaults>
</compile_context>

<pallas_src>
import functools
import math

import jax
import jax.numpy as jnp
from jax import lax
from jax.experimental import pallas as pl
from jax.experimental.pallas import tpu as pltpu


# Matmul operand dtype (accumulation is always f32, elementwise math always f32).
_MM_DTYPE = jnp.bfloat16
_VMEM_LIMIT = 32 * 1024 * 1024


def _mm(a, b):
    """MXU matmul: bf16 operands, f32 accumulation."""
    return jnp.dot(a.astype(_MM_DTYPE), b.astype(_MM_DTYPE),
                   preferred_element_type=jnp.float32)


# ----------------------------------------------------------------------------
# Kernels
# ----------------------------------------------------------------------------

def _embed_kernel(xe_ref, xm_ref, wc_ref, wt_ref, bt_ref, o_ref):
    # TokenEmbedding: circular Conv1d(C->D, k=3, pad=1, no bias) as three accumulated MXU
    # matmuls (one per tap, shifted inputs via XLU rolls), plus Linear(6->D) temporal embedding.
    xe = xe_ref[0]                                   # (L, C) f32
    xm = xm_ref[0]                                   # (L, 6) f32
    L = xe.shape[0]
    x_prev = pltpu.roll(xe, 1, axis=0)               # x[(t-1) % L]
    x_next = pltpu.roll(xe, L - 1, axis=0)           # x[(t+1) % L]
    val = _mm(x_prev, wc_ref[0]) + _mm(xe, wc_ref[1]) + _mm(x_next, wc_ref[2])
    tmp = _mm(xm, wt_ref[...]) + bt_ref[...]
    o_ref[0] = val + tmp


def data_embedding(x_enc, x_mark, w_conv, w_t, b_t):
    B, L, C = x_enc.shape
    D = w_t.shape[1]
    Mk = x_mark.shape[2]
    return pl.pallas_call(
        _embed_kernel,
        out_shape=jax.ShapeDtypeStruct((B, L, D), jnp.float32),
        grid=(B,),
        in_specs=[
            pl.BlockSpec((1, L, C), lambda b: (b, 0, 0)),
            pl.BlockSpec((1, L, Mk), lambda b: (b, 0, 0)),
            pl.BlockSpec(w_conv.shape, lambda b: (0, 0, 0)),
            pl.BlockSpec(w_t.shape, lambda b: (0, 0)),
            pl.BlockSpec(b_t.shape, lambda b: (0, 0)),
        ],
        out_specs=pl.BlockSpec((1, L, D), lambda b: (b, 0, 0)),
        compiler_params=pltpu.CompilerParams(
            dimension_semantics=("parallel",),
            vmem_limit_bytes=_VMEM_LIMIT),
    )(x_enc, x_mark, w_conv, w_t, b_t)


def _encoder_layer_kernel(x_ref, wqkv_ref, bqkv_ref, wo_ref, bo_ref,
                          w1_ref, w2_ref, mavg_ref, pdel_ref, o_ref, *, top_k):
    # One full EncoderLayer per batch element:
    #   AutoCorrelationLayer -> residual -> SeriesDecomp -> FFN(gelu) -> residual -> SeriesDecomp
    x = x_ref[0]                                     # (L, D) f32
    L, D = x.shape
    f32 = jnp.float32

    # ---- fused q|k|v projection: one (L,D) @ (D,3D) MXU matmul.
    # D is a multiple of 128 in the example so the lane slices below are 128-aligned (no relayout).
    qkv = _mm(x, wqkv_ref[...]) + bqkv_ref[...]      # (L, 3D)
    q = qkv[:, 0 * D:1 * D]
    k = qkv[:, 1 * D:2 * D]
    v = qkv[:, 2 * D:3 * D]

    # ---- AutoCorrelation (inference path).  Heads folded into D = H*E (exact: mean_value
    # averages over (H,E) and delay aggregation shifts every channel equally).
    #
    # Circular cross-correlation: the O(L^2*D) work is a single MXU matmul  S[r,c] = q[r,:].k[c,:]
    S = lax.dot_general(q.astype(_MM_DTYPE), k.astype(_MM_DTYPE),
                        (((1,), (1,)), ((), ())), preferred_element_type=f32)   # (L, L)

    # Wrapped-diagonal sums of S on the MXU using the host-precomputed one-hot selector
    # pdel[r, c, tau] = [(r - c) % L == tau]:
    #     mv[tau] = (1/D) * sum_r  S[r, :] @ pdel[r]   ( == irfft(rfft(q)*conj(rfft(k)))[tau]/D )
    # This is the same arithmetic as the single  S.reshape(1,L*L) @ P  matmul, written as L small
    # row matmuls because Mosaic does not reliably lower the (L,L)->(1,L*L) value relayout.
    # No per-tau masked VPU reductions remain; the O(L^3) work sits on the MXU.
    # TODO(synk): for large L (>~128) where the L^3 selector is infeasible, switch to the roll
    # fallback  mv[tau] = (1/D) * jnp.sum(q * pltpu.roll(k, tau, axis=0)).
    mv = jnp.zeros((1, L), f32)
    for r in range(L):
        mv = mv + _mm(S[r:r + 1, :], pdel_ref[r])
    mv = mv * (1.0 / float(D))

    # top-k delays + softmax weights -> dense per-delay weight vector wfull (1, L)
    lane = lax.broadcasted_iota(jnp.int32, (1, L), 1)
    work = mv
    wfull = jnp.zeros((1, L), f32)
    z = 0.0
    m0 = None
    for i in range(top_k):
        m = jnp.max(work)
        if i == 0:
            m0 = m                                   # global max -> stable softmax
        idx = jnp.min(jnp.where(work == m, lane, L))  # first occurrence on ties
        sel = lane == idx
        e = jnp.exp(m - m0)
        wfull = wfull + e * sel.astype(f32)
        z = z + e
        work = jnp.where(sel, -jnp.inf, work)
    wfull = wfull * (1.0 / z)

    # time-delay aggregation:  agg[t,:] = sum_tau wfull[tau] * v[(t + tau) % L, :]
    # Static-shift XLU rolls of v; no dense (L,L) aggregation matrix is materialized.
    agg = jnp.zeros((L, D), f32)
    for tau in range(L):
        v_shift = v if tau == 0 else pltpu.roll(v, L - tau, axis=0)   # v[(t+tau)%L]
        agg = agg + wfull[:, tau:tau + 1] * v_shift

    # out projection + residual
    xs = x + _mm(agg, wo_ref[...]) + bo_ref[...]

    # SeriesDecomp #1: seasonal = x - moving_avg(x); trend via precomputed banded matrix (MXU)
    s1 = xs - _mm(mavg_ref[...], xs)

    # pointwise Conv1d(d->d_ff, k=1, no bias) -> gelu -> Conv1d(d_ff->d, k=1, no bias)
    hid = _mm(s1, w1_ref[...])
    # TODO(synk): F.gelu is exact erf-based; tanh approximation used (erf lowering not
    # guaranteed in Mosaic).  Max deviation ~1e-3.
    c = 0.7978845608028654  # sqrt(2/pi)
    hid = 0.5 * hid * (1.0 + jnp.tanh(c * (hid + 0.044715 * hid * hid * hid)))
    y = _mm(hid, w2_ref[...])

    # SeriesDecomp #2 on (x + y)
    xy = s1 + y
    o_ref[0] = xy - _mm(mavg_ref[...], xy)


def encoder_layer(x, w_qkv, b_qkv, w_o, b_o, w_1, w_2, m_avg, p_delay, *, top_k):
    B, L, D = x.shape
    kern = functools.partial(_encoder_layer_kernel, top_k=top_k)
    act_spec = pl.BlockSpec((1, L, D), lambda b: (b, 0, 0))

    def const_spec(w):
        # Constant index_map: weights / selectors stay resident in VMEM across the batch grid.
        # TODO(synk): on v7x also mark these pipeline_mode=pl.Buffered(1) (double-buffering
        # never-changing blocks is pure VMEM waste); bf16 weights already halve the residency.
        n = len(w.shape)
        return pl.BlockSpec(w.shape, lambda b, n=n: (0,) * n)

    return pl.pallas_call(
        kern,
        out_shape=jax.ShapeDtypeStruct((B, L, D), jnp.float32),
        grid=(B,),
        in_specs=[
            act_spec,
            const_spec(w_qkv), const_spec(b_qkv),
            const_spec(w_o), const_spec(b_o),
            const_spec(w_1), const_spec(w_2),
            const_spec(m_avg), const_spec(p_delay),
        ],
        out_specs=act_spec,
        compiler_params=pltpu.CompilerParams(
            dimension_semantics=("parallel",),
            vmem_limit_bytes=_VMEM_LIMIT),
    )(x, w_qkv, b_qkv, w_o, b_o, w_1, w_2, m_avg, p_delay)


def _norm_proj_kernel(x_ref, g_ref, b_ref, wp_ref, bp_ref, o_ref, *, eps):
    # my_Layernorm (LayerNorm minus per-feature time mean) fused with projection1 applied only to
    # the last time step -> (1, 1).  The full normalized (L, D) tensor never leaves VMEM.
    x = x_ref[0]                                     # (L, D) f32
    L = x.shape[0]
    mu = jnp.mean(x, axis=1, keepdims=True)
    xc = x - mu
    var = jnp.mean(xc * xc, axis=1, keepdims=True)
    x_hat = xc * lax.rsqrt(var + eps) * g_ref[...] + b_ref[...]
    bias = jnp.mean(x_hat, axis=0, keepdims=True)    # (1, D)
    last = x_hat[L - 1:L, :] - bias                  # (1, D)
    o_ref[...] = jnp.sum(last * wp_ref[...], axis=1, keepdims=True) + bp_ref[...]


def norm_and_project(x, gamma, beta, w_p_row, b_p, eps=1e-5):
    B, L, D = x.shape
    kern = functools.partial(_norm_proj_kernel, eps=eps)
    return pl.pallas_call(
        kern,
        out_shape=jax.ShapeDtypeStruct((B, 1), jnp.float32),
        grid=(B,),
        in_specs=[
            pl.BlockSpec((1, L, D), lambda b: (b, 0, 0)),
            pl.BlockSpec(gamma.shape, lambda b: (0, 0)),
            pl.BlockSpec(beta.shape, lambda b: (0, 0)),
            pl.BlockSpec(w_p_row.shape, lambda b: (0, 0)),
            pl.BlockSpec(b_p.shape, lambda b: (0, 0)),
        ],
        out_specs=pl.BlockSpec((1, 1), lambda b: (b, 0)),
        compiler_params=pltpu.CompilerParams(
            dimension_semantics=("parallel",),
            vmem_limit_bytes=_VMEM_LIMIT),
    )(x, gamma, beta, w_p_row, b_p)


# ----------------------------------------------------------------------------
# Host-precomputed constant matrices (shared by every layer / grid step)
# ----------------------------------------------------------------------------

def moving_avg_matrix(L, K):
    # M[t, s] = (1/K) * #{ j in [-(K-1)/2, (K-1)/2] : clamp(t+j, 0, L-1) == s }
    # => trend = M @ x reproduces AvgPool1d(K, stride=1) with replicate padding (SeriesDecomp).
    assert K % 2 == 1 and L >= K, "odd moving-average kernel and L >= kernel assumed"
    h = (K - 1) // 2
    r = jnp.arange(L, dtype=jnp.int32)[:, None]
    c = jnp.arange(L, dtype=jnp.int32)[None, :]
    cnt = (jnp.abs(c - r) <= h).astype(jnp.float32)
    cnt = cnt + (c == 0).astype(jnp.float32) * jnp.maximum(h - r, 0).astype(jnp.float32)
    cnt = cnt + (c == L - 1).astype(jnp.float32) * jnp.maximum(h - (L - 1 - r), 0).astype(jnp.float32)
    return cnt / float(K)


def delay_selector(L):
    # pdel[r, c, tau] = [(r - c) % L == tau]  (one-hot, exactly representable in bf16)
    r = jnp.arange(L, dtype=jnp.int32)[:, None, None]
    c = jnp.arange(L, dtype=jnp.int32)[None, :, None]
    t = jnp.arange(L, dtype=jnp.int32)[None, None, :]
    return (((r - c) % L) == t).astype(jnp.float32)


# ----------------------------------------------------------------------------
# Model glue (parameter setup + forward orchestration)
# ----------------------------------------------------------------------------

def init_params(key, *, enc_in, d_model, d_ff, e_layers, mark_dim=6):
    keys = jax.random.split(key, 5 + 6 * e_layers)
    ki = iter(keys)

    def dense(k, shape, fan_in, dtype=jnp.float32):
        w = jax.random.normal(k, shape, jnp.float32) / math.sqrt(float(fan_in))
        return w.astype(dtype)

    params = {
        # TokenEmbedding conv taps (3, C, D), bf16 (matmul operands)
        "w_conv": dense(next(ki), (3, enc_in, d_model), 3 * enc_in, _MM_DTYPE),
        "w_t": dense(next(ki), (mark_dim, d_model), mark_dim, _MM_DTYPE),
        "b_t": dense(next(ki), (1, d_model), mark_dim),
        "w_p1": dense(next(ki), (1, d_model), d_model),     # projection1 (enc_in == d_model)
        "b_p1": dense(next(ki), (1, 1), d_model),
        "gamma": jnp.ones((1, d_model), jnp.float32),       # my_Layernorm affine
        "beta": jnp.zeros((1, d_model), jnp.float32),
        "layers": [],
    }
    for _ in range(e_layers):
        layer = {
            "w_qkv": dense(next(ki), (d_model, 3 * d_model), d_model, _MM_DTYPE),
            "b_qkv": dense(next(ki), (1, 3 * d_model), d_model),
            "w_o": dense(next(ki), (d_model, d_model), d_model, _MM_DTYPE),
            "b_o": dense(next(ki), (1, d_model), d_model),
            "w_1": dense(next(ki), (d_model, d_ff), d_model, _MM_DTYPE),
            "w_2": dense(next(ki), (d_ff, d_model), d_ff, _MM_DTYPE),
        }
        params["layers"].append(layer)
    return params


def autoformer_forward(x, params, *, factor=5, moving_avg=9):
    B, L, total = x.shape
    C = total - 6
    x_enc = x[:, :, :C]
    x_mark = x[:, :, C:]
    # clamp like the reference requires for torch.topk to be valid
    top_k = max(1, min(int(factor * math.log(L)), L))

    # DataEmbedding_wo_pos (dropout p=0 -> identity)
    enc = data_embedding(x_enc, x_mark, params["w_conv"], params["w_t"], params["b_t"])

    # constants shared by every SeriesDecomp / AutoCorrelation of every layer (hoisted host-side)
    m_avg = moving_avg_matrix(L, moving_avg).astype(_MM_DTYPE)
    p_delay = delay_selector(L).astype(_MM_DTYPE)

    # Encoder: e_layers fully-fused EncoderLayer kernels
    for layer in params["layers"]:
        enc = encoder_layer(enc, layer["w_qkv"], layer["b_qkv"], layer["w_o"], layer["b_o"],
                            layer["w_1"], layer["w_2"], m_avg, p_delay, top_k=top_k)

    # my_Layernorm + projection1 on the last time step, fused -> (B, 1)
    # TODO(synk): could be fused into the last encoder layer kernel to save one HBM round trip.
    out = norm_and_project(enc, params["gamma"], params["beta"], params["w_p1"], params["b_p1"])
    return out


# ----------------------------------------------------------------------------
# Main
# ----------------------------------------------------------------------------

if __name__ == "__main__":
    B, L = 2, 16
    d_model, d_ff, e_layers = 128, 128, 2     # lane-dense (multiples of 128)
    enc_in, mark_dim = 128, 6                 # enc_in == d_model (required by projection1)
    factor, moving_avg = 5, 9

    key = jax.random.PRNGKey(0)
    kx, kp = jax.random.split(key)
    x = jax.random.normal(kx, (B, L, enc_in + mark_dim), jnp.float32)

    params = init_params(kp, enc_in=enc_in, d_model=d_model, d_ff=d_ff, e_layers=e_layers,
                         mark_dim=mark_dim)

    out = autoformer_forward(x, params, factor=factor, moving_avg=moving_avg)
    out = jax.block_until_ready(out)
    assert out.shape == (B, 1) and out.dtype == jnp.float32
    print("KERNEL_OK")
</pallas_src>

<mosaic_0001>
module attributes {stable_mosaic.version = 11 : i64} {
  func.func @_embed_kernel(%arg0: i32, %arg1: memref<1x16x128xf32, #tpu.memory_space<vmem>>, %arg2: memref<1x16x6xf32, #tpu.memory_space<vmem>>, %arg3: memref<3x128x128xbf16, #tpu.memory_space<vmem>>, %arg4: memref<6x128xbf16, #tpu.memory_space<vmem>>, %arg5: memref<1x128xf32, #tpu.memory_space<vmem>>, %arg6: memref<1x16x128xf32, #tpu.memory_space<vmem>>) attributes {dimension_semantics = [#tpu.dimension_semantics<parallel>], iteration_bounds = array<i64: 2>, scalar_prefetch = 0 : i64, scratch_operands = 0 : i64, tpu.core_type = #tpu.core_type<tc>, window_params = [{transform_indices = @transform_0, window_bounds = array<i64: 1, 16, 128>}, {transform_indices = @transform_1, window_bounds = array<i64: 1, 16, 6>}, {pipeline_mode = #tpu.pipeline_mode<synchronous>, transform_indices = @transform_2, window_bounds = array<i64: 3, 128, 128>}, {pipeline_mode = #tpu.pipeline_mode<synchronous>, transform_indices = @transform_3, window_bounds = array<i64: 6, 128>}, {pipeline_mode = #tpu.pipeline_mode<synchronous>, transform_indices = @transform_4, window_bounds = array<i64: 1, 128>}, {transform_indices = @transform_5, window_bounds = array<i64: 1, 16, 128>}]} {
    %c0 = arith.constant 0 : index
    %c0_0 = arith.constant 0 : index
    %c0_1 = arith.constant 0 : index
    %0 = vector.load %arg1[%c0, %c0_0, %c0_1] : memref<1x16x128xf32, #tpu.memory_space<vmem>>, vector<1x16x128xf32>
    %1 = vector.shape_cast %0 : vector<1x16x128xf32> to vector<16x128xf32>
    %c0_2 = arith.constant 0 : index
    %c0_3 = arith.constant 0 : index
    %c0_4 = arith.constant 0 : index
    %2 = vector.load %arg2[%c0_2, %c0_3, %c0_4] : memref<1x16x6xf32, #tpu.memory_space<vmem>>, vector<1x16x6xf32>
    %3 = vector.shape_cast %2 : vector<1x16x6xf32> to vector<16x6xf32>
    %c1_i32 = arith.constant 1 : i32
    %4 = tpu.dynamic_rotate %1 by %c1_i32 dim 0 : vector<16x128xf32>, i32 -> vector<16x128xf32>
    %c15_i32 = arith.constant 15 : i32
    %5 = tpu.dynamic_rotate %1 by %c15_i32 dim 0 : vector<16x128xf32>, i32 -> vector<16x128xf32>
    %c0_5 = arith.constant 0 : index
    %c0_6 = arith.constant 0 : index
    %c0_7 = arith.constant 0 : index
    %6 = vector.load %arg3[%c0_5, %c0_6, %c0_7] : memref<3x128x128xbf16, #tpu.memory_space<vmem>>, vector<1x128x128xbf16>
    %7 = vector.shape_cast %6 : vector<1x128x128xbf16> to vector<128x128xbf16>
    %8 = arith.truncf %4 : vector<16x128xf32> to vector<16x128xbf16>
    %cst = arith.constant dense<0.000000e+00> : vector<16x128xf32>
    %9 = tpu.matmul %8, %7, %cst {dimension_numbers = #tpu.dot_dimension_numbers<[1], [0], [0], [1], [0, 0, 1, 1], [], []>} : vector<16x128xbf16>, vector<128x128xbf16>, vector<16x128xf32> -> vector<16x128xf32>
    %c1 = arith.constant 1 : index
    %c0_8 = arith.constant 0 : index
    %c0_9 = arith.constant 0 : index
    %10 = vector.load %arg3[%c1, %c0_8, %c0_9] : memref<3x128x128xbf16, #tpu.memory_space<vmem>>, vector<1x128x128xbf16>
    %11 = vector.shape_cast %10 : vector<1x128x128xbf16> to vector<128x128xbf16>
    %12 = arith.truncf %1 : vector<16x128xf32> to vector<16x128xbf16>
    %cst_10 = arith.constant dense<0.000000e+00> : vector<16x128xf32>
    %13 = tpu.matmul %12, %11, %cst_10 {dimension_numbers = #tpu.dot_dimension_numbers<[1], [0], [0], [1], [0, 0, 1, 1], [], []>} : vector<16x128xbf16>, vector<128x128xbf16>, vector<16x128xf32> -> vector<16x128xf32>
    %14 = arith.addf %9, %13 : vector<16x128xf32>
    %c2 = arith.constant 2 : index
    %c0_11 = arith.constant 0 : index
    %c0_12 = arith.constant 0 : index
    %15 = vector.load %arg3[%c2, %c0_11, %c0_12] : memref<3x128x128xbf16, #tpu.memory_space<vmem>>, vector<1x128x128xbf16>
    %16 = vector.shape_cast %15 : vector<1x128x128xbf16> to vector<128x128xbf16>
    %17 = arith.truncf %5 : vector<16x128xf32> to vector<16x128xbf16>
    %cst_13 = arith.constant dense<0.000000e+00> : vector<16x128xf32>
    %18 = tpu.matmul %17, %16, %cst_13 {dimension_numbers = #tpu.dot_dimension_numbers<[1], [0], [0], [1], [0, 0, 1, 1], [], []>} : vector<16x128xbf16>, vector<128x128xbf16>, vector<16x128xf32> -> vector<16x128xf32>
    %19 = arith.addf %14, %18 : vector<16x128xf32>
    %c0_14 = arith.constant 0 : index
    %c0_15 = arith.constant 0 : index
    %20 = vector.load %arg4[%c0_14, %c0_15] : memref<6x128xbf16, #tpu.memory_space<vmem>>, vector<6x128xbf16>
    %21 = arith.truncf %3 : vector<16x6xf32> to vector<16x6xbf16>
    %cst_16 = arith.constant dense<0.000000e+00> : vector<16x128xf32>
    %22 = tpu.matmul %21, %20, %cst_16 {dimension_numbers = #tpu.dot_dimension_numbers<[1], [0], [0], [1], [0, 0, 1, 1], [], []>} : vector<16x6xbf16>, vector<6x128xbf16>, vector<16x128xf32> -> vector<16x128xf32>
    %c0_17 = arith.constant 0 : index
    %c0_18 = arith.constant 0 : index
    %23 = vector.load %arg5[%c0_17, %c0_18] : memref<1x128xf32, #tpu.memory_space<vmem>>, vector<1x128xf32>
    %24 = vector.broadcast %23 : vector<1x128xf32> to vector<16x128xf32>
    %25 = arith.addf %22, %24 : vector<16x128xf32>
    %26 = arith.addf %19, %25 : vector<16x128xf32>
    %c0_19 = arith.constant 0 : index
    %c0_20 = arith.constant 0 : index
    %c0_21 = arith.constant 0 : index
    %27 = vector.load %arg6[%c0_19, %c0_20, %c0_21] : memref<1x16x128xf32, #tpu.memory_space<vmem>>, vector<1x16x128xf32>
    %28 = vector.shape_cast %27 : vector<1x16x128xf32> to vector<16x128xf32>
    %29 = vector.shape_cast %26 : vector<16x128xf32> to vector<1x16x128xf32>
    tpu.vector_store %arg6[%c0_19, %c0_20, %c0_21], %29 {strides = array<i32>} : memref<1x16x128xf32, #tpu.memory_space<vmem>>, vector<1x16x128xf32>,
    return
  }
  func.func @transform_0(%arg0: i32) -> (i32, i32, i32) {
    %c0_i32 = arith.constant 0 : i32
    %c0_i32_0 = arith.constant 0 : i32
    %c0_i32_1 = arith.constant 0 : i32
    return %arg0, %c0_i32, %c0_i32_0 : i32, i32, i32
  }
  func.func @transform_1(%arg0: i32) -> (i32, i32, i32) {
    %c0_i32 = arith.constant 0 : i32
    %c0_i32_0 = arith.constant 0 : i32
    %c0_i32_1 = arith.constant 0 : i32
    return %arg0, %c0_i32, %c0_i32_0 : i32, i32, i32
  }
  func.func @transform_2(%arg0: i32) -> (i32, i32, i32) {
    %c0_i32 = arith.constant 0 : i32
    %c0_i32_0 = arith.constant 0 : i32
    %c0_i32_1 = arith.constant 0 : i32
    %c0_i32_2 = arith.constant 0 : i32
    return %c0_i32, %c0_i32_0, %c0_i32_1 : i32, i32, i32
  }
  func.func @transform_3(%arg0: i32) -> (i32, i32) {
    %c0_i32 = arith.constant 0 : i32
    %c0_i32_0 = arith.constant 0 : i32
    %c0_i32_1 = arith.constant 0 : i32
    return %c0_i32, %c0_i32_0 : i32, i32
  }
  func.func @transform_4(%arg0: i32) -> (i32, i32) {
    %c0_i32 = arith.constant 0 : i32
    %c0_i32_0 = arith.constant 0 : i32
    %c0_i32_1 = arith.constant 0 : i32
    return %c0_i32, %c0_i32_0 : i32, i32
  }
  func.func @transform_5(%arg0: i32) -> (i32, i32, i32) {
    %c0_i32 = arith.constant 0 : i32
    %c0_i32_0 = arith.constant 0 : i32
    %c0_i32_1 = arith.constant 0 : i32
    return %arg0, %c0_i32, %c0_i32_0 : i32, i32, i32
  }
}

</mosaic_0001>

<llo_original>
// kernel: tpu_custom_call.1
$region0: #{tpu_custom_call.1}
  #allocation0 [shape = 'u32[]', space=smem, size = 0x4, offset = 0x4, fixed_abs, tag = 'smem constant byte address 0x4 - core index']
  #allocation1 [shape = 'u32[72,128]{1,0:T(1,128)}', space=vmem, size = 0x9000, scoped, tag = 'internal scratch']
  %s0 = inlined_call_operand.vmem [shape: f32[2,16,128], index: 0, kind: input, shape index: {}]
  %s1 = inlined_call_operand.vmem [shape: f32[2,16,6], index: 1, kind: input, shape index: {}]
  %s2 = inlined_call_operand.hbm [shape: bf16[3,128,128], index: 2, kind: input, shape index: {}]
  %s3 = inlined_call_operand.vmem [shape: bf16[6,128], index: 3, kind: input, shape index: {}]
  %s4 = inlined_call_operand.vmem [shape: f32[1,128], index: 4, kind: input, shape index: {}]
  %s5 = inlined_call_operand.hbm [shape: f32[2,16,128], index: 5, kind: output, shape index: {}]
  %s6 = sld [smem:[#allocation0]]
  $region57: #{tpu_custom_call.1} parent=0
    _
  %s8 = ssub.s32 1, %s6
  %s9 = scalar_select 0, %s8, %s6
  $region1: #{tpu_custom_call.1} parent=0
    #allocation2 [shape = 'u8[98304]{0}', space=vmem, size = 0x18000, scoped, tag = 'input window, operand 2, single buffered']
    #allocation3 [shape = 's32[2]{0}', space=sflag, size = 0x8, scoped, tag = 'scoped memory for tpu_custom_call.1']
    #allocation4 [shape = 's32[2]{0}', space=sflag, size = 0x8, scoped, tag = 'scoped memory for tpu_custom_call.1']
    #allocation5 [shape = 'u8[16384]{0}', space=vmem, size = 0x4000, scoped, tag = 'output window, operand 0']
    %10 = vsyncpa [#allocation3], 0
    %11 = vsyncpa [#allocation4], 0
    %s12 = scalar_lea.sflag [#allocation4], 1
    %13 = vsyncpa %s12, 0
    loop: start=0, step=1, limit=4
    $region2: #{tpu_custom_call.1} parent=1 // loop_pre_header
      _
    $region3: #{tpu_custom_call.1} parent=1 // loop_header
      %s15 = sphi 0, %s19
      %p16 = scmp.ge.s32.totalorder %s15, 4
      %s25 = sphi 0, %s27
      %s28 = sphi 0, %s25
      %s29 = sphi 0, %s28
      %s45 = sphi 0, %s29
      %s51 = sphi 0, %s53
      %s54 = sphi 0, %s51
      %s55 = sphi 0, %s54
      %s71 = sphi 0, %s55
      %s75 = sphi 0, %s75
      %s77 = sphi 0, %s75
      %s78 = sphi 0, %s77
      %s92 = sphi 0, %s78
      %s96 = sphi 0, %s96
      %s98 = sphi 0, %s96
      %s99 = sphi 0, %s98
      %s113 = sphi 0, %s99
      %s117 = sphi 0, %s117
      %s119 = sphi 0, %s117
      %s120 = sphi 0, %s119
      %s134 = sphi 0, %s120
      %s140 = sphi 0, %s142
      %s143 = sphi 0, %s140
      %s144 = sphi 0, %s143
      %s160 = sphi 0, %s144
    $region4: #{tpu_custom_call.1} parent=1 // loop_header_branch
      %18 = sbr.rel (%p16) target = $region8
    $region5: #{tpu_custom_call.1} parent=1 // loop_body
      %s20 = ssub.s32 %s15, 1
      %s21 = ssub.s32 %s15, 2
      %s22 = sadd.s32 %s15, 1
      %s23 = ssub.s32 %s15, %s22
      %p24 = scmp.eq.s32.totalorder %s23, 0
      %s26 = sadd.s32 %s25, 1
      %s27 = scalar_select %p24, %s25, %s26
      %p30 = pneg %p24
      %p31 = scmp.eq.s32.totalorder %s15, 1
      %p32 = por %p30, %p31
      %p33 = scmp.ne.s32.totalorder %s25, %s28
      %p34 = scmp.eq.s32.totalorder %s15, 0
      %p35 = por %p33, %p34
      %p36 = scmp.ne.s32.totalorder %s25, %s28
      %p37 = scmp.eq.s32.totalorder %s20, 1
      %p38 = por %p36, %p37
      %p39 = scmp.ne.s32.totalorder %s28, %s29
      %p40 = scmp.eq.s32.totalorder %s20, 0
      %p41 = por %p39, %p40
      %p42 = scmp.ne.s32.totalorder %s28, %s29
      %p43 = scmp.eq.s32.totalorder %s21, 1
      %p44 = por %p42, %p43
      %p46 = scmp.ne.s32.totalorder %s29, %s45
      %p47 = scmp.eq.s32.totalorder %s21, 0
      %p48 = por %p46, %p47
      %s49 = ssub.s32 %s15, %s22
      %p50 = scmp.eq.s32.totalorder %s49, 0
      %s52 = sadd.s32 %s51, 1
      %s53 = scalar_select %p50, %s51, %s52
      %p56 = pneg %p50
      %p57 = scmp.eq.s32.totalorder %s15, 1
      %p58 = por %p56, %p57
      %p59 = scmp.ne.s32.totalorder %s51, %s54
      %p60 = scmp.eq.s32.totalorder %s15, 0
      %p61 = por %p59, %p60
      %p62 = scmp.ne.s32.totalorder %s51, %s54
      %p63 = scmp.eq.s32.totalorder %s20, 1
      %p64 = por %p62, %p63
      %p65 = scmp.ne.s32.totalorder %s54, %s55
      %p66 = scmp.eq.s32.totalorder %s20, 0
      %p67 = por %p65, %p66
      %p68 = scmp.ne.s32.totalorder %s54, %s55
      %p69 = scmp.eq.s32.totalorder %s21, 1
      %p70 = por %p68, %p69
      %p72 = scmp.ne.s32.totalorder %s55, %s71
      %p73 = scmp.eq.s32.totalorder %s21, 0
      %p74 = por %p72, %p73
      %s76 = sadd.s32 %s75, 1
      %p79 = scmp.eq.s32.totalorder %s15, 1
      %p80 = scmp.ne.s32.totalorder %s75, %s77
      %p81 = scmp.eq.s32.totalorder %s15, 0
      %p82 = por %p80, %p81
      %p83 = scmp.ne.s32.totalorder %s75, %s77
      %p84 = scmp.eq.s32.totalorder %s20, 1
      %p85 = por %p83, %p84
      %p86 = scmp.ne.s32.totalorder %s77, %s78
      %p87 = scmp.eq.s32.totalorder %s20, 0
      %p88 = por %p86, %p87
      %p89 = scmp.ne.s32.totalorder %s77, %s78
      %p90 = scmp.eq.s32.totalorder %s21, 1
      %p91 = por %p89, %p90
      %p93 = scmp.ne.s32.totalorder %s78, %s92
      %p94 = scmp.eq.s32.totalorder %s21, 0
      %p95 = por %p93, %p94
      %s97 = sadd.s32 %s96, 1
      %p100 = scmp.eq.s32.totalorder %s15, 1
      %p101 = scmp.ne.s32.totalorder %s96, %s98
      %p102 = scmp.eq.s32.totalorder %s15, 0
      %p103 = por %p101, %p102
      %p104 = scmp.ne.s32.totalorder %s96, %s98
      %p105 = scmp.eq.s32.totalorder %s20, 1
      %p106 = por %p104, %p105
      %p107 = scmp.ne.s32.totalorder %s98, %s99
      %p108 = scmp.eq.s32.totalorder %s20, 0
      %p109 = por %p107, %p108
      %p110 = scmp.ne.s32.totalorder %s98, %s99
      %p111 = scmp.eq.s32.totalorder %s21, 1
      %p112 = por %p110, %p111
      %p114 = scmp.ne.s32.totalorder %s99, %s113
      %p115 = scmp.eq.s32.totalorder %s21, 0
      %p116 = por %p114, %p115
      %s118 = sadd.s32 %s117, 1
      %p121 = scmp.eq.s32.totalorder %s15, 1
      %p122 = scmp.ne.s32.totalorder %s117, %s119
      %p123 = scmp.eq.s32.totalorder %s15, 0
      %p124 = por %p122, %p123
      %p125 = scmp.ne.s32.totalorder %s117, %s119
      %p126 = scmp.eq.s32.totalorder %s20, 1
      %p127 = por %p125, %p126
      %p128 = scmp.ne.s32.totalorder %s119, %s120
      %p129 = scmp.eq.s32.totalorder %s20, 0
      %p130 = por %p128, %p129
      %p131 = scmp.ne.s32.totalorder %s119, %s120
      %p132 = scmp.eq.s32.totalorder %s21, 1
      %p133 = por %p131, %p132
      %p135 = scmp.ne.s32.totalorder %s120, %s134
      %p136 = scmp.eq.s32.totalorder %s21, 0
      %p137 = por %p135, %p136
      %s138 = ssub.s32 %s15, %s22
      %p139 = scmp.eq.s32.totalorder %s138, 0
      %s141 = sadd.s32 %s140, 1
      %s142 = scalar_select %p139, %s140, %s141
      %p145 = pneg %p139
      %p146 = scmp.eq.s32.totalorder %s15, 1
      %p147 = por %p145, %p146
      %p148 = scmp.ne.s32.totalorder %s140, %s143
      %p149 = scmp.eq.s32.totalorder %s15, 0
      %p150 = por %p148, %p149
      %p151 = scmp.ne.s32.totalorder %s140, %s143
      %p152 = scmp.eq.s32.totalorder %s20, 1
      %p153 = por %p151, %p152
      %p154 = scmp.ne.s32.totalorder %s143, %s144
      %p155 = scmp.eq.s32.totalorder %s20, 0
      %p156 = por %p154, %p155
      %p157 = scmp.ne.s32.totalorder %s143, %s144
      %p158 = scmp.eq.s32.totalorder %s21, 1
      %p159 = por %p157, %p158
      %p161 = scmp.ne.s32.totalorder %s144, %s160
      %p162 = scmp.eq.s32.totalorder %s21, 0
      %p163 = por %p161, %p162
      %p164 = scmp.le.s32.totalorder 1, %s15
      %p165 = scmp.lt.s32.totalorder %s15, 3
      %p166 = pnand %p164, %p165
      %p167 = pneg %p166
      // Predicated region
      $region9: #{tpu_custom_call.1} parent=5 // pred_check
        _
      $region10: #{tpu_custom_call.1} parent=5 // pred_check_branch
        %169 = sbr.rel (%p166) target = $region12
      $region11: #{tpu_custom_call.1} parent=5 // pred_region
        %s170 = ssub.s32 %s15, 1
        // Predicated region
        $region13: #{tpu_custom_call.1} parent=11 // pred_check
          %p171 = pneg %p88
        $region14: #{tpu_custom_call.1} parent=11 // pred_check_branch
          %173 = sbr.rel (%p171) target = $region16
        $region15: #{tpu_custom_call.1} parent=11 // pred_region
          %175 = vsyncadd [#allocation3], 0
          %s176 = sshll.u32 %s2, 4
          %s177 = int_to_ptr.hbm [resolvable:$true] %s176
          %s178 = sshll.u32 [#allocation2], 4
          %s179 = int_to_ptr.vmem [resolvable:$true] %s178
          %184 = dma.hbm_to_vmem [thread:$0]  %s177, 3072, %s179, [#allocation3], 64, 64, 4
        $region16: #{tpu_custom_call.1} parent=11 // pred_fallthru
          _
        // Predicated region
        $region17: #{tpu_custom_call.1} parent=11 // pred_check
          %p185 = pneg %p109
        $region18: #{tpu_custom_call.1} parent=11 // pred_check_branch
          %187 = sbr.rel (%p185) target = $region20
        $region19: #{tpu_custom_call.1} parent=11 // pred_region
          _
        $region20: #{tpu_custom_call.1} parent=11 // pred_fallthru
          _
        // Predicated region
        $region21: #{tpu_custom_call.1} parent=11 // pred_check
          %p188 = pneg %p130
        $region22: #{tpu_custom_call.1} parent=11 // pred_check_branch
          %190 = sbr.rel (%p188) target = $region24
        $region23: #{tpu_custom_call.1} parent=11 // pred_region
          _
        $region24: #{tpu_custom_call.1} parent=11 // pred_fallthru
          _
      $region12: #{tpu_custom_call.1} parent=5 // pred_fallthru
        _
      %p191 = scmp.lt.s32.totalorder %s15, 2
      // Predicated region
      $region25: #{tpu_custom_call.1} parent=5 // pred_check
        %p192 = pneg %p191
      $region26: #{tpu_custom_call.1} parent=5 // pred_check_branch
        %194 = sbr.rel (%p192) target = $region28
      $region27: #{tpu_custom_call.1} parent=5 // pred_region
        // Predicated region
        $region29: #{tpu_custom_call.1} parent=27 // pred_check
          %p195 = pneg %p35
        $region30: #{tpu_custom_call.1} parent=27 // pred_check_branch
          %197 = sbr.rel (%p195) target = $region32
        $region31: #{tpu_custom_call.1} parent=27 // pred_region
          %p198 = scmp.lt.s32.totalorder %s15, 1
          %s199 = scalar_select %p198, %s15, 1
          %s200 = smul.addr %s199, 2
          %s201 = smul.addr %s200, 8
          %s202 = scalar_lea.vmem %s0, %s201
        $region32: #{tpu_custom_call.1} parent=27 // pred_fallthru
          _
        // Predicated region
        $region33: #{tpu_custom_call.1} parent=27 // pred_check
          %p203 = pneg %p61
        $region34: #{tpu_custom_call.1} parent=27 // pred_check_branch
          %205 = sbr.rel (%p203) target = $region36
        $region35: #{tpu_custom_call.1} parent=27 // pred_region
          %p206 = scmp.lt.s32.totalorder %s15, 1
          %s207 = scalar_select %p206, %s15, 1
          %s208 = smul.addr %s207, 2
          %s209 = smul.addr %s208, 8
          %s210 = scalar_lea.vmem %s1, %s209
        $region36: #{tpu_custom_call.1} parent=27 // pred_fallthru
          _
      $region28: #{tpu_custom_call.1} parent=5 // pred_fallthru
        _
      %p211 = scmp.le.s32.totalorder 1, %s15
      %p212 = scmp.lt.s32.totalorder %s15, 3
      %p213 = pnand %p211, %p212
      %p214 = pneg %p213
      // Predicated region
      $region37: #{tpu_custom_call.1} parent=5 // pred_check
        _
      $region38: #{tpu_custom_call.1} parent=5 // pred_check_branch
        %216 = sbr.rel (%p213) target = $region40
      $region39: #{tpu_custom_call.1} parent=5 // pred_region
        %s217 = ssub.s32 %s15, 1
        // Predicated region
        $region41: #{tpu_custom_call.1} parent=39 // pred_check
          %p218 = pneg %p88
        $region42: #{tpu_custom_call.1} parent=39 // pred_check_branch
          %220 = sbr.rel (%p218) target = $region44
        $region43: #{tpu_custom_call.1} parent=39 // pred_region
          %222 = dma.done [#allocation3], 3072
        $region44: #{tpu_custom_call.1} parent=39 // pred_fallthru
          _
        %p223 = scmp.lt.s32.totalorder %s20, 1
        %s224 = scalar_select %p223, %s20, 1
        %s225 = smul.addr %s224, 2
        %s226 = smul.addr %s225, 8
        %s227 = scalar_lea.vmem %s0, %s226
        %p228 = pneg %p41
        %p229 = pneg %p38
        %p230 = scmp.lt.s32.totalorder %s20, 1
        %s231 = scalar_select %p230, %s20, 1
        %s232 = smul.addr %s231, 2
        %s233 = smul.addr %s232, 8
        %s234 = scalar_lea.vmem %s1, %s233
        %p235 = pneg %p67
        %p236 = pneg %p64
        %p237 = pneg %p88
        %p238 = pneg %p85
        %p239 = pneg %p109
        %p240 = pneg %p106
        %p241 = pneg %p130
        %p242 = pneg %p127
        %p243 = pneg %p156
        %p244 = pneg %p153
        %s245 = sand.u32 %s143, 1
        %s246 = scalar_lea.sflag [#allocation4], %s245
        %s247 = sand.u32 %s143, 1
        %s248 = smul.addr %s247, 16
        %s249 = scalar_lea.vmem [#allocation5], %s248
        %p250 = scmp.lt.s32.totalorder %s20, 1
        %s251 = scalar_select %p250, %s20, 1
        %s252 = smul.addr %s251, 2
        %s253 = smul.addr %s252, 8
        %s254 = scalar_lea.vmem %s0, %s253
        %p255 = scmp.lt.s32.totalorder %s20, 1
        %s256 = scalar_select %p255, %s20, 1
        %s257 = smul.addr %s256, 2
        %s258 = smul.addr %s257, 8
        %s259 = scalar_lea.vmem %s1, %s258
        %v261 = vld [vmem:[%s254] sm:$0xff]
        %v262 = vld [vmem:[%s254 + $0x8] sm:$0xff]
        %v263 = vld [vmem:[%s259] sm:$0xff]
        %v264 = vld [vmem:[%s259 + $0x8] sm:$0xff]
        %v265 = vrot.slane %v261, 7
        %v266 = vrot.slane %v262, 7
        %v267 = vlaneseq
        %v268 = vshrl.u32 %v267, 7
        %vm269 = vcmp.lt.s32.totalorder %v268, 1
        %v270 = vsel %vm269, %v265, %v266
        %v271 = vsel %vm269, %v266, %v265
        %v272 = vrot.slane %v261, 1
        %v273 = vrot.slane %v262, 1
        %vm274 = vcmp.lt.s32.totalorder %v268, 7
        %v275 = vsel %vm274, %v272, %v273
        %v276 = vsel %vm274, %v273, %v272
        %v277 = vld [vmem:[#allocation2] sm:$0xf]
        %v278 = vld [vmem:[#allocation2 + $0x4] sm:$0xf]
        %v279 = vld [vmem:[#allocation2 + $0x8] sm:$0xf]
        %v280 = vld [vmem:[#allocation2 + $0xc] sm:$0xf]
        %v281 = vld [vmem:[#allocation2 + $0x10] sm:$0xf]
        %v282 = vld [vmem:[#allocation2 + $0x14] sm:$0xf]
        %v283 = vld [vmem:[#allocation2 + $0x18] sm:$0xf]
        %v284 = vld [vmem:[#allocation2 + $0x1c] sm:$0xf]
        %v285 = vld [vmem:[#allocation2 + $0x20] sm:$0xf]
        %v286 = vld [vmem:[#allocation2 + $0x24] sm:$0xf]
        %v287 = vld [vmem:[#allocation2 + $0x28] sm:$0xf]
        %v288 = vld [vmem:[#allocation2 + $0x2c] sm:$0xf]
        %v289 = vld [vmem:[#allocation2 + $0x30] sm:$0xf]
        %v290 = vld [vmem:[#allocation2 + $0x34] sm:$0xf]
        %v291 = vld [vmem:[#allocation2 + $0x38] sm:$0xf]
        %v292 = vld [vmem:[#allocation2 + $0x3c] sm:$0xf]
        %v293 = vpack.c.bf16 %v270, %v271
        %s294 = scalar_lea.vmem [#allocation2], 64
        %v295 = vld [vmem:[%s294] sm:$0xf]
        %v296 = vld [vmem:[%s294 + $0x4] sm:$0xf]
        %v297 = vld [vmem:[%s294 + $0x8] sm:$0xf]
        %v298 = vld [vmem:[%s294 + $0xc] sm:$0xf]
        %v299 = vld [vmem:[%s294 + $0x10] sm:$0xf]
        %v300 = vld [vmem:[%s294 + $0x14] sm:$0xf]
        %v301 = vld [vmem:[%s294 + $0x18] sm:$0xf]
        %v302 = vld [vmem:[%s294 + $0x1c] sm:$0xf]
        %v303 = vld [vmem:[%s294 + $0x20] sm:$0xf]
        %v304 = vld [vmem:[%s294 + $0x24] sm:$0xf]
        %v305 = vld [vmem:[%s294 + $0x28] sm:$0xf]
        %v306 = vld [vmem:[%s294 + $0x2c] sm:$0xf]
        %v307 = vld [vmem:[%s294 + $0x30] sm:$0xf]
        %v308 = vld [vmem:[%s294 + $0x34] sm:$0xf]
        %v309 = vld [vmem:[%s294 + $0x38] sm:$0xf]
        %v310 = vld [vmem:[%s294 + $0x3c] sm:$0xf]
        %v311 = vpack.c.bf16 %v262, %v261
        %v328 = vunpack.c.l.b16 %v295
        %v329 = vunpack.c.l.b16 %v296
        %v330 = vunpack.c.l.b16 %v297
        %v331 = vunpack.c.l.b16 %v298
        %v332 = vunpack.c.l.b16 %v299
        %v333 = vunpack.c.l.b16 %v300
        %v334 = vunpack.c.l.b16 %v301
        %v335 = vunpack.c.l.b16 %v302
        %v336 = vunpack.c.l.b16 %v303
        %v337 = vunpack.c.l.b16 %v304
        %v338 = vunpack.c.l.b16 %v305
        %v339 = vunpack.c.l.b16 %v306
        %v340 = vunpack.c.l.b16 %v307
        %v341 = vunpack.c.l.b16 %v308
        %v342 = vunpack.c.l.b16 %v309
        %v343 = vunpack.c.l.b16 %v310
        %v344 = vpack.c.b16 %v329, %v328
        %v345 = vpack.c.b16 %v331, %v330
        %v346 = vpack.c.b16 %v333, %v332
        %v347 = vpack.c.b16 %v335, %v334
        %v348 = vpack.c.b16 %v337, %v336
        %v349 = vpack.c.b16 %v339, %v338
        %v350 = vpack.c.b16 %v341, %v340
        %v351 = vpack.c.b16 %v343, %v342
        %360 = vmatpush.bf16.msra.mxu0 %v351
        %361 = vmatpush.bf16.msra.mxu0 %v350
        %362 = vmatpush.bf16.msra.mxu0 %v349
        %363 = vmatpush.bf16.msra.mxu0 %v348
        %364 = vmatpush.bf16.msra.mxu0 %v347
        %365 = vmatpush.bf16.msra.mxu0 %v346
        %366 = vmatpush.bf16.msra.mxu0 %v345
        %367 = vmatpush.bf16.msra.mxu0 %v344
        %368 = vmatmul.bf16.gmra.mxu0 %v311
        %v369 = vpop.f32.mrf.mxu0
        %v370 = vadd.f32 0.0, %v369
        %v371 = vpop.f32.mrf.mxu0
        %v372 = vadd.f32 0.0, %v371
        %373 = vdwg.mxu0
        %v390 = vunpack.c.l.b16 %v277
        %v391 = vunpack.c.l.b16 %v278
        %v392 = vunpack.c.l.b16 %v279
        %v393 = vunpack.c.l.b16 %v280
        %v394 = vunpack.c.l.b16 %v281
        %v395 = vunpack.c.l.b16 %v282
        %v396 = vunpack.c.l.b16 %v283
        %v397 = vunpack.c.l.b16 %v284
        %v398 = vunpack.c.l.b16 %v285
        %v399 = vunpack.c.l.b16 %v286
        %v400 = vunpack.c.l.b16 %v287
        %v401 = vunpack.c.l.b16 %v288
        %v402 = vunpack.c.l.b16 %v289
        %v403 = vunpack.c.l.b16 %v290
        %v404 = vunpack.c.l.b16 %v291
        %v405 = vunpack.c.l.b16 %v292
        %v406 = vpack.c.b16 %v391, %v390
        %v407 = vpack.c.b16 %v393, %v392
        %v408 = vpack.c.b16 %v395, %v394
        %v409 = vpack.c.b16 %v397, %v396
        %v410 = vpack.c.b16 %v399, %v398
        %v411 = vpack.c.b16 %v401, %v400
        %v412 = vpack.c.b16 %v403, %v402
        %v413 = vpack.c.b16 %v405, %v404
        %422 = vmatpush.bf16.msra.mxu0 %v413
        %423 = vmatpush.bf16.msra.mxu0 %v412
        %424 = vmatpush.bf16.msra.mxu0 %v411
        %425 = vmatpush.bf16.msra.mxu0 %v410
        %426 = vmatpush.bf16.msra.mxu0 %v409
        %427 = vmatpush.bf16.msra.mxu0 %v408
        %428 = vmatpush.bf16.msra.mxu0 %v407
        %429 = vmatpush.bf16.msra.mxu0 %v406
        %430 = vmatmul.bf16.gmra.mxu0 %v293
        %v431 = vpop.f32.mrf.mxu0
        %v432 = vadd.f32 %v370, %v431
        %v433 = vpop.f32.mrf.mxu0
        %v434 = vadd.f32 %v372, %v433
        %435 = vdwg.mxu0
        %s436 = scalar_lea.vmem [#allocation2], 128
        %v437 = vld [vmem:[%s436] sm:$0xf]
        %v438 = vld [vmem:[%s436 + $0x4] sm:$0xf]
        %v439 = vld [vmem:[%s436 + $0x8] sm:$0xf]
        %v440 = vld [vmem:[%s436 + $0xc] sm:$0xf]
        %v441 = vld [vmem:[%s436 + $0x10] sm:$0xf]
        %v442 = vld [vmem:[%s436 + $0x14] sm:$0xf]
        %v443 = vld [vmem:[%s436 + $0x18] sm:$0xf]
        %v444 = vld [vmem:[%s436 + $0x1c] sm:$0xf]
        %v445 = vld [vmem:[%s436 + $0x20] sm:$0xf]
        %v446 = vld [vmem:[%s436 + $0x24] sm:$0xf]
        %v447 = vld [vmem:[%s436 + $0x28] sm:$0xf]
        %v448 = vld [vmem:[%s436 + $0x2c] sm:$0xf]
        %v449 = vld [vmem:[%s436 + $0x30] sm:$0xf]
        %v450 = vld [vmem:[%s436 + $0x34] sm:$0xf]
        %v451 = vld [vmem:[%s436 + $0x38] sm:$0xf]
        %v452 = vld [vmem:[%s436 + $0x3c] sm:$0xf]
        %v453 = vpack.c.bf16 %v276, %v275
        %v470 = vunpack.c.l.b16 %v437
        %v471 = vunpack.c.l.b16 %v438
        %v472 = vunpack.c.l.b16 %v439
        %v473 = vunpack.c.l.b16 %v440
        %v474 = vunpack.c.l.b16 %v441
        %v475 = vunpack.c.l.b16 %v442
        %v476 = vunpack.c.l.b16 %v443
        %v477 = vunpack.c.l.b16 %v444
        %v478 = vunpack.c.l.b16 %v445
        %v479 = vunpack.c.l.b16 %v446
        %v480 = vunpack.c.l.b16 %v447
        %v481 = vunpack.c.l.b16 %v448
        %v482 = vunpack.c.l.b16 %v449
        %v483 = vunpack.c.l.b16 %v450
        %v484 = vunpack.c.l.b16 %v451
        %v485 = vunpack.c.l.b16 %v452
        %v486 = vpack.c.b16 %v471, %v470
        %v487 = vpack.c.b16 %v473, %v472
        %v488 = vpack.c.b16 %v475, %v474
        %v489 = vpack.c.b16 %v477, %v476
        %v490 = vpack.c.b16 %v479, %v478
        %v491 = vpack.c.b16 %v481, %v480
        %v492 = vpack.c.b16 %v483, %v482
        %v493 = vpack.c.b16 %v485, %v484
        %502 = vmatpush.bf16.msra.mxu0 %v493
        %503 = vmatpush.bf16.msra.mxu0 %v492
        %504 = vmatpush.bf16.msra.mxu0 %v491
        %505 = vmatpush.bf16.msra.mxu0 %v490
        %506 = vmatpush.bf16.msra.mxu0 %v489
        %507 = vmatpush.bf16.msra.mxu0 %v488
        %508 = vmatpush.bf16.msra.mxu0 %v487
        %509 = vmatpush.bf16.msra.mxu0 %v486
        %510 = vmatmul.bf16.gmra.mxu0 %v453
        %v511 = vpop.f32.mrf.mxu0
        %v512 = vadd.f32 0.0, %v511
        %v513 = vpop.f32.mrf.mxu0
        %v514 = vadd.f32 0.0, %v513
        %515 = vdwg.mxu0
        %v516 = vadd.f32 %v432, %v512
        %v517 = vadd.f32 %v434, %v514
        %v518 = vld [vmem:[%s3] sm:$0x7]
        %v519 = vpack.c.bf16 %v264, %v263
        %v520 = vld [vmem:[%s4] sm:$0x1]
        %v522 = vperm.slane %v520, 0
        %vm524 = vcmask 48128
        %v526 = vsel %vm524, %v519, 0
        %vm528 = vcmask 1042432
        %v530 = vsel %vm528, %v518, 0
        %532 = vmatpush.bf16.msra.mxu0 0
        %533 = vmatpush.bf16.msra.mxu0 0
        %534 = vmatpush.bf16.msra.mxu0 0
        %535 = vmatpush.bf16.msra.mxu0 0
        %536 = vmatpush.bf16.msra.mxu0 0
        %537 = vmatpush.bf16.msra.mxu0 0
        %538 = vmatpush.bf16.msra.mxu0 0
        %539 = vmatpush.bf16.msra.mxu0 %v530
        %540 = vmatmul.bf16.gmra.mxu0 %v526
        %v541 = vpop.f32.mrf.mxu0
        %v542 = vadd.f32 %v522, %v541
        %v543 = vpop.f32.mrf.mxu0
        %v544 = vadd.f32 %v522, %v543
        %545 = vdwg.mxu0
        %v546 = vadd.f32 %v516, %v542
        %v547 = vadd.f32 %v517, %v544
        %548 = vst [vmem:[%s249] sm:$0xff] %v546
        %549 = vst [vmem:[%s249 + $0x8] sm:$0xff] %v547
        %s550 = sand.u32 %s143, 1
        %s551 = scalar_lea.sflag [#allocation4], %s550
        %s552 = sand.u32 %s143, 1
        %s553 = smul.addr %s552, 16
        %s554 = scalar_lea.vmem [#allocation5], %s553
        // Predicated region
        $region45: #{tpu_custom_call.1} parent=39 // pred_check
          %p555 = pneg %p153
        $region46: #{tpu_custom_call.1} parent=39 // pred_check_branch
          %557 = sbr.rel (%p555) target = $region48
        $region47: #{tpu_custom_call.1} parent=39 // pred_region
          %559 = vsyncadd %s551, 0
          %s560 = smul.addr %s20, 2
          %s561 = smul.addr %s560, 8
          %s562 = scalar_lea.hbm %s5, %s561
          %s563 = sshll.u32 %s554, 4
          %s564 = int_to_ptr.vmem [resolvable:$true] %s563
          %s565 = sshll.u32 %s562, 4
          %s566 = int_to_ptr.hbm [resolvable:$true] %s565
          %571 = dma.vmem_to_hbm [thread:$0]  %s564, 256, %s566, %s551, 128, 128, 8
        $region48: #{tpu_custom_call.1} parent=39 // pred_fallthru
          _
      $region40: #{tpu_custom_call.1} parent=5 // pred_fallthru
        _
      %p572 = scmp.le.s32.totalorder 2, %s15
      // Predicated region
      $region49: #{tpu_custom_call.1} parent=5 // pred_check
        %p573 = pneg %p572
      $region50: #{tpu_custom_call.1} parent=5 // pred_check_branch
        %575 = sbr.rel (%p573) target = $region52
      $region51: #{tpu_custom_call.1} parent=5 // pred_region
        %s576 = ssub.s32 %s15, 2
        // Predicated region
        $region53: #{tpu_custom_call.1} parent=51 // pred_check
          %p577 = pneg %p159
        $region54: #{tpu_custom_call.1} parent=51 // pred_check_branch
          %579 = sbr.rel (%p577) target = $region56
        $region55: #{tpu_custom_call.1} parent=51 // pred_region
          %s580 = sand.u32 %s144, 1
          %s581 = scalar_lea.sflag [#allocation4], %s580
          %s582 = sand.u32 %s144, 1
          %s583 = smul.addr %s582, 16
          %s584 = scalar_lea.vmem [#allocation5], %s583
          %586 = dma.done %s581, 256
        $region56: #{tpu_custom_call.1} parent=51 // pred_fallthru
          _
      $region52: #{tpu_custom_call.1} parent=5 // pred_fallthru
        _
    $region6: #{tpu_custom_call.1} parent=1 // loop_footer
      %s19 = sadd.s32 1, %s15
    $region7: #{tpu_custom_call.1} parent=1 // loop_footer_branch
      %14 = sbr.rel target = $region3
    $region8: #{tpu_custom_call.1} parent=1 // loop_exit
      _
    %587 = vsyncpa [#allocation3], 1
    %s588 = scalar_lea.sflag [#allocation3], 1
    %589 = vsyncpa %s588, 1
    %590 = vsyncpa [#allocation4], 1
    %s591 = scalar_lea.sflag [#allocation4], 1
    %592 = vsyncpa %s591, 1

</llo_original>
